<compile_context>
chip_gen: v6e
topology: v6e:2x2x1
jax: 0.10.0
libtpu: 0.0.40
codegen_flags: <defaults>
</compile_context>

<pallas_src>
import functools

import jax
import jax.numpy as jnp
from jax.experimental import pallas as pl
from jax.experimental.pallas import tpu as pltpu

EPS = 1e-6          # box-embedding epsilon constant (module-level EPS in the original repo)
PACK = 4            # lane-packing factor: 4 * from_feature_dim(32) = 128 lanes
PALLAS_MIN_ROWS = 4096  # below this, XLA's fused dot beats pallas_call fixed overhead


def _round_up(x, m):
    return ((x + m - 1) // m) * m


# ---------------------------------------------------------------------------
# Kernel: fused linear -> relu -> linear, box-EPS folded into W2/b2, 4x lane-packed.
# ---------------------------------------------------------------------------
def _mlp_box_kernel(x_ref, w1_ref, b1_ref, w2_ref, b2_ref, feat_ref):
    """x_ref: (TM, 4F)  w1_ref: (4F, 4H)  b1_ref: (1, 4H)
       w2_ref: (4H, 4*2D)  b2_ref: (1, 4*2D)  feat_ref: (TM, 4*2D)

    W2's per-block right halves are zeros and b2's are EPS, so one matmul + bias add
    produces concat([y, EPS*ones], -1) for 4 original rows per packed row, and we do a
    single full-width (128-lane) store."""
    h = jnp.dot(x_ref[...], w1_ref[...], preferred_element_type=jnp.float32)
    h = jnp.maximum(h + b1_ref[...], 0.0)
    y = jnp.dot(h.astype(w2_ref.dtype), w2_ref[...],
                preferred_element_type=jnp.float32) + b2_ref[...]
    feat_ref[...] = y.astype(feat_ref.dtype)


# ---------------------------------------------------------------------------
# One-time (load-time) weight preparation.  FREEZE=True => these are constants.
# ---------------------------------------------------------------------------
def prepare_params(w1, b1, w2, b2, *, dim, compute_dtype=jnp.float32):
    """w1: (H, F), w2: (D, H) in PyTorch (out, in) layout.

    Returns lane-packed block-diagonal weights:
      w1_blk (PACK*F, PACK*H), b1_blk (1, PACK*H),
      w2_blk (PACK*H, PACK*2D), b2_blk (1, PACK*2D).
    Matmul weights are cast to compute_dtype (f32 or bf16); biases stay f32 so the
    EPS constant and the f32 epilogue are exact."""
    w1_t = jnp.asarray(w1, jnp.float32).T                       # (F, H)
    b1_r = jnp.asarray(b1, jnp.float32)                         # (H,)
    w2_t = jnp.asarray(w2, jnp.float32).T                       # (H, D)
    b2_r = jnp.asarray(b2, jnp.float32)                         # (D,)

    # Fold the box-EPS concat into the frozen second linear layer.
    w2_aug = jnp.concatenate([w2_t, jnp.zeros((w2_t.shape[0], dim), jnp.float32)], -1)
    b2_aug = jnp.concatenate([b2_r, jnp.full((dim,), EPS, jnp.float32)])

    # 4x block-diagonal lane packing -> every kernel operand is 128-lane dense.
    w1_blk = jax.scipy.linalg.block_diag(*([w1_t] * PACK))      # (4F, 4H)
    w2_blk = jax.scipy.linalg.block_diag(*([w2_aug] * PACK))    # (4H, 4*2D)
    b1_blk = jnp.tile(b1_r, PACK).reshape(1, -1)                # (1, 4H)
    b2_blk = jnp.tile(b2_aug, PACK).reshape(1, -1)              # (1, 4*2D)

    return (w1_blk.astype(compute_dtype), b1_blk,
            w2_blk.astype(compute_dtype), b2_blk)


# ---------------------------------------------------------------------------
# relations: pure constant for this config -> build once and cache (FREEZE=True).
# ---------------------------------------------------------------------------
def relations_row(dim, dtype=jnp.float32):
    """Lazy (4*dim,) row; consumers can broadcast to (n, n, 4*dim) themselves."""
    return jnp.concatenate([jnp.zeros((2 * dim,), dtype),
                            jnp.full((2 * dim,), EPS, dtype)])


@functools.lru_cache(maxsize=8)
def make_relations(n, dim, dtype=jnp.float32):
    """relations == concat([zeros(n,n,2*dim), EPS*ones(n,n,2*dim)], -1).

    Depends only on (n, dim); built once here instead of re-materializing an
    O(n^2 * 4*dim) HBM fill on every forward call."""
    return jnp.broadcast_to(relations_row(dim, dtype), (n, n, 4 * dim))


# ---------------------------------------------------------------------------
# Feature forward (MLP + folded EPS concat).
# ---------------------------------------------------------------------------
@functools.partial(jax.jit, static_argnames=("use_pallas",))
def _feature_forward(x, w1_blk, b1_blk, w2_blk, b2_blk, *, use_pallas):
    n, f = x.shape
    fp, hp = w1_blk.shape           # (PACK*F, PACK*H)
    owp = w2_blk.shape[1]           # PACK * 2*dim
    pack = fp // f
    out_w = owp // pack             # 2*dim

    x = x.astype(w1_blk.dtype)

    # Packed-row tiling: ~1 MiB per buffer per grid step (8192 f32 / 16384 bf16
    # original rows), and >=2 grid steps whenever there is enough work so v7x's
    # two TensorCores both get tiles.
    itemsize = jnp.dtype(w1_blk.dtype).itemsize
    base_tm = 2048 if itemsize >= 4 else 4096
    n_pack = pl.cdiv(n, pack)
    tm = min(base_tm, max(8, _round_up(pl.cdiv(n_pack, 2), 8)))
    n_pack_pad = _round_up(n_pack, tm)
    n_pad = n_pack_pad * pack

    xp = jnp.pad(x, ((0, n_pad - n), (0, 0))).reshape(n_pack_pad, fp)

    if use_pallas:
        grid = (n_pack_pad // tm,)
        out = pl.pallas_call(
            _mlp_box_kernel,
            out_shape=jax.ShapeDtypeStruct((n_pack_pad, owp), jnp.float32),
            grid=grid,
            in_specs=[
                pl.BlockSpec((tm, fp), lambda i: (i, 0)),     # x: tiled over packed rows
                pl.BlockSpec((fp, hp), lambda i: (0, 0)),     # w1_blk: resident
                pl.BlockSpec((1, hp), lambda i: (0, 0)),      # b1_blk: resident
                pl.BlockSpec((hp, owp), lambda i: (0, 0)),    # w2_blk: resident
                pl.BlockSpec((1, owp), lambda i: (0, 0)),     # b2_blk: resident
            ],
            out_specs=pl.BlockSpec((tm, owp), lambda i: (i, 0)),
            compiler_params=pltpu.CompilerParams(
                dimension_semantics=("parallel",),
                # ~4 MiB double-buffered at these tiles; explicit limit keeps headroom
                # obvious on v7x (64 MiB physical / 32 MiB scoped default) if TM grows.
                vmem_limit_bytes=32 * 1024 * 1024,
            ),
        )(xp, w1_blk, b1_blk, w2_blk, b2_blk)
    else:
        # Small-N fallback: plain fused ops beat pallas_call fixed overhead here.
        h = jnp.maximum(
            jnp.dot(xp, w1_blk, preferred_element_type=jnp.float32) + b1_blk, 0.0)
        out = jnp.dot(h.astype(w2_blk.dtype), w2_blk,
                      preferred_element_type=jnp.float32) + b2_blk

    # Free row-major reinterpretation back to (rows, 2*dim); drop padded rows.
    return out.reshape(n_pad, out_w)[:n]


def feature_extractor_forward(x, params, *, dim, use_pallas=None,
                              materialize_relations=True):
    """Mirrors FeatureExtractor.forward for the from_feature_dim / box config.

    Returns (feature (N, 2*dim), relations).  relations is the cached full
    (N, N, 4*dim) constant by default, or the lazy (4*dim,) row if
    materialize_relations=False."""
    n = x.shape[0]
    if use_pallas is None:
        use_pallas = n >= PALLAS_MIN_ROWS
    feature = _feature_forward(x, *params, use_pallas=bool(use_pallas))
    if materialize_relations:
        relations = make_relations(int(n), int(dim), jnp.float32)
    else:
        relations = relations_row(dim, jnp.float32)
    return feature, relations


# ---------------------------------------------------------------------------
# Pure-JAX reference of the original PyTorch forward.
# ---------------------------------------------------------------------------
def _reference(x, w1, b1, w2, b2, dim):
    h = jnp.maximum(x @ w1.T + b1, 0.0)
    y = h @ w2.T + b2
    feat = jnp.concatenate([y, jnp.full_like(y, EPS)], -1)
    n = x.shape[0]
    rel = jnp.concatenate(
        [jnp.zeros((n, n, 2 * dim), x.dtype),
         jnp.full((n, n, 2 * dim), EPS, x.dtype)], -1)
    return feat, rel


if __name__ == "__main__":
    N, FROM_FEATURE_DIM, DIM = 8, 32, 16
    HIDDEN = DIM  # MLP(from_feature_dim, dim, dim)

    key = jax.random.PRNGKey(0)
    kx, k1, k2, k3, k4 = jax.random.split(key, 5)

    # Deterministic init (torch-Linear style uniform(-1/sqrt(fan_in), 1/sqrt(fan_in))).
    bnd1 = 1.0 / (FROM_FEATURE_DIM ** 0.5)
    bnd2 = 1.0 / (HIDDEN ** 0.5)
    w1 = jax.random.uniform(k1, (HIDDEN, FROM_FEATURE_DIM), jnp.float32, -bnd1, bnd1)
    b1 = jax.random.uniform(k2, (HIDDEN,), jnp.float32, -bnd1, bnd1)
    w2 = jax.random.uniform(k3, (DIM, HIDDEN), jnp.float32, -bnd2, bnd2)
    b2 = jax.random.uniform(k4, (DIM,), jnp.float32, -bnd2, bnd2)
    # reset_parameters(): rep == 'box' and from_feature_dim -> linear_2.weight /= 10
    w2 = w2 / 10.0

    x = jax.random.normal(kx, (N, FROM_FEATURE_DIM), jnp.float32)

    ref_feat, ref_rel = _reference(x, w1, b1, w2, b2, DIM)

    # --- f32 operands, Pallas kernel forced (exercise the kernel at the test shape) ---
    params_f32 = prepare_params(w1, b1, w2, b2, dim=DIM, compute_dtype=jnp.float32)
    feat, rel = feature_extractor_forward(x, params_f32, dim=DIM, use_pallas=True)
    feat, rel = jax.block_until_ready(feat), jax.block_until_ready(rel)
    assert feat.shape == (N, 2 * DIM) and rel.shape == (N, N, 4 * DIM)
    assert jnp.allclose(feat, ref_feat, atol=1e-5, rtol=1e-5)
    assert jnp.allclose(rel, ref_rel)

    # --- auto dispatch (small N -> XLA fallback) must agree too ---
    feat2, _ = feature_extractor_forward(x, params_f32, dim=DIM)
    assert jnp.allclose(jax.block_until_ready(feat2), ref_feat, atol=1e-5, rtol=1e-5)

    # --- bf16 operand path (halves HBM traffic at large N); looser tolerance ---
    params_bf16 = prepare_params(w1, b1, w2, b2, dim=DIM, compute_dtype=jnp.bfloat16)
    feat3, _ = feature_extractor_forward(x, params_bf16, dim=DIM, use_pallas=True)
    assert jnp.allclose(jax.block_until_ready(feat3), ref_feat, atol=3e-2, rtol=3e-2)

    print("KERNEL_OK")
</pallas_src>

<mosaic_0001>
module attributes {stable_mosaic.version = 11 : i64} {
  func.func @_mlp_box_kernel(%arg0: i32, %arg1: memref<8x128xf32, #tpu.memory_space<vmem>>, %arg2: memref<128x64xf32, #tpu.memory_space<vmem>>, %arg3: memref<1x64xf32, #tpu.memory_space<vmem>>, %arg4: memref<64x128xf32, #tpu.memory_space<vmem>>, %arg5: memref<1x128xf32, #tpu.memory_space<vmem>>, %arg6: memref<8x128xf32, #tpu.memory_space<vmem>>) attributes {dimension_semantics = [#tpu.dimension_semantics<parallel>], iteration_bounds = array<i64: 1>, scalar_prefetch = 0 : i64, scratch_operands = 0 : i64, tpu.core_type = #tpu.core_type<tc>, window_params = [{transform_indices = @transform_0, window_bounds = array<i64: 8, 128>}, {pipeline_mode = #tpu.pipeline_mode<synchronous>, transform_indices = @transform_1, window_bounds = array<i64: 128, 64>}, {pipeline_mode = #tpu.pipeline_mode<synchronous>, transform_indices = @transform_2, window_bounds = array<i64: 1, 64>}, {pipeline_mode = #tpu.pipeline_mode<synchronous>, transform_indices = @transform_3, window_bounds = array<i64: 64, 128>}, {pipeline_mode = #tpu.pipeline_mode<synchronous>, transform_indices = @transform_4, window_bounds = array<i64: 1, 128>}, {transform_indices = @transform_5, window_bounds = array<i64: 8, 128>}]} {
    %c0 = arith.constant 0 : index
    %c0_0 = arith.constant 0 : index
    %0 = vector.load %arg1[%c0, %c0_0] : memref<8x128xf32, #tpu.memory_space<vmem>>, vector<8x128xf32>
    %c0_1 = arith.constant 0 : index
    %c0_2 = arith.constant 0 : index
    %1 = vector.load %arg2[%c0_1, %c0_2] : memref<128x64xf32, #tpu.memory_space<vmem>>, vector<128x64xf32>
    %cst = arith.constant dense<0.000000e+00> : vector<8x64xf32>
    %2 = tpu.matmul %0, %1, %cst {dimension_numbers = #tpu.dot_dimension_numbers<[1], [0], [0], [1], [0, 0, 1, 1], [], []>} : vector<8x128xf32>, vector<128x64xf32>, vector<8x64xf32> -> vector<8x64xf32>
    %c0_3 = arith.constant 0 : index
    %c0_4 = arith.constant 0 : index
    %3 = vector.load %arg3[%c0_3, %c0_4] : memref<1x64xf32, #tpu.memory_space<vmem>>, vector<1x64xf32>
    %4 = vector.broadcast %3 : vector<1x64xf32> to vector<8x64xf32>
    %5 = arith.addf %2, %4 : vector<8x64xf32>
    %cst_5 = arith.constant 0.000000e+00 : f32
    %6 = vector.broadcast %cst_5 : f32 to vector<8x64xf32>
    %7 = arith.maximumf %5, %6 : vector<8x64xf32>
    %c0_6 = arith.constant 0 : index
    %c0_7 = arith.constant 0 : index
    %8 = vector.load %arg4[%c0_6, %c0_7] : memref<64x128xf32, #tpu.memory_space<vmem>>, vector<64x128xf32>
    %cst_8 = arith.constant dense<0.000000e+00> : vector<8x128xf32>
    %9 = tpu.matmul %7, %8, %cst_8 {dimension_numbers = #tpu.dot_dimension_numbers<[1], [0], [0], [1], [0, 0, 1, 1], [], []>} : vector<8x64xf32>, vector<64x128xf32>, vector<8x128xf32> -> vector<8x128xf32>
    %c0_9 = arith.constant 0 : index
    %c0_10 = arith.constant 0 : index
    %10 = vector.load %arg5[%c0_9, %c0_10] : memref<1x128xf32, #tpu.memory_space<vmem>>, vector<1x128xf32>
    %11 = vector.broadcast %10 : vector<1x128xf32> to vector<8x128xf32>
    %12 = arith.addf %9, %11 : vector<8x128xf32>
    %c0_11 = arith.constant 0 : index
    %c0_12 = arith.constant 0 : index
    %13 = vector.load %arg6[%c0_11, %c0_12] : memref<8x128xf32, #tpu.memory_space<vmem>>, vector<8x128xf32>
    tpu.vector_store %arg6[%c0_11, %c0_12], %12 {strides = array<i32>} : memref<8x128xf32, #tpu.memory_space<vmem>>, vector<8x128xf32>,
    return
  }
  func.func @transform_0(%arg0: i32) -> (i32, i32) {
    %c0_i32 = arith.constant 0 : i32
    %c0_i32_0 = arith.constant 0 : i32
    return %arg0, %c0_i32 : i32, i32
  }
  func.func @transform_1(%arg0: i32) -> (i32, i32) {
    %c0_i32 = arith.constant 0 : i32
    %c0_i32_0 = arith.constant 0 : i32
    %c0_i32_1 = arith.constant 0 : i32
    return %c0_i32, %c0_i32_0 : i32, i32
  }
  func.func @transform_2(%arg0: i32) -> (i32, i32) {
    %c0_i32 = arith.constant 0 : i32
    %c0_i32_0 = arith.constant 0 : i32
    %c0_i32_1 = arith.constant 0 : i32
    return %c0_i32, %c0_i32_0 : i32, i32
  }
  func.func @transform_3(%arg0: i32) -> (i32, i32) {
    %c0_i32 = arith.constant 0 : i32
    %c0_i32_0 = arith.constant 0 : i32
    %c0_i32_1 = arith.constant 0 : i32
    return %c0_i32, %c0_i32_0 : i32, i32
  }
  func.func @transform_4(%arg0: i32) -> (i32, i32) {
    %c0_i32 = arith.constant 0 : i32
    %c0_i32_0 = arith.constant 0 : i32
    %c0_i32_1 = arith.constant 0 : i32
    return %c0_i32, %c0_i32_0 : i32, i32
  }
  func.func @transform_5(%arg0: i32) -> (i32, i32) {
    %c0_i32 = arith.constant 0 : i32
    %c0_i32_0 = arith.constant 0 : i32
    return %arg0, %c0_i32 : i32, i32
  }
}

</mosaic_0001>

<llo_original>
// kernel: _feature_forward.1
$region0: #{_feature_forward.1}
  #allocation0 [shape = 'u32[]', space=smem, size = 0x4, offset = 0x4, fixed_abs, tag = 'smem constant byte address 0x4 - core index']
  #allocation1 [shape = 'u32[144,128]{1,0:T(1,128)}', space=vmem, size = 0x12000, scoped, tag = 'internal scratch']
  %s0 = inlined_call_operand.vmem [shape: f32[8,128], index: 0, kind: input, shape index: {}]
  %s1 = inlined_call_operand.vmem [shape: f32[128,64], index: 1, kind: input, shape index: {}]
  %s2 = inlined_call_operand.vmem [shape: f32[1,64], index: 2, kind: input, shape index: {}]
  %s3 = inlined_call_operand.vmem [shape: f32[64,128], index: 3, kind: input, shape index: {}]
  %s4 = inlined_call_operand.vmem [shape: f32[1,128], index: 4, kind: input, shape index: {}]
  %s5 = inlined_call_operand.vmem [shape: f32[8,128], index: 5, kind: output, shape index: {}]
  %s6 = sld [smem:[#allocation0]]
  $region30: #{_feature_forward.1} parent=0
    _
  %s8 = ssub.s32 1, %s6
  %s9 = scalar_select 0, %s8, %s6
  // Predicated region
  $region2: #{_feature_forward.1} parent=0 // pred_check
    _
  $region3: #{_feature_forward.1} parent=0 // pred_check_branch
    %11 = sbr.rel (0) target = $region5
  $region4: #{_feature_forward.1} parent=0 // pred_region
    _
  $region5: #{_feature_forward.1} parent=0 // pred_fallthru
    _
  // Predicated region
  $region6: #{_feature_forward.1} parent=0 // pred_check
    _
  $region7: #{_feature_forward.1} parent=0 // pred_check_branch
    %13 = sbr.rel (0) target = $region9
  $region8: #{_feature_forward.1} parent=0 // pred_region
    _
  $region9: #{_feature_forward.1} parent=0 // pred_fallthru
    _
  // Predicated region
  $region10: #{_feature_forward.1} parent=0 // pred_check
    _
  $region11: #{_feature_forward.1} parent=0 // pred_check_branch
    %15 = sbr.rel (0) target = $region13
  $region12: #{_feature_forward.1} parent=0 // pred_region
    _
  $region13: #{_feature_forward.1} parent=0 // pred_fallthru
    _
  // Predicated region
  $region14: #{_feature_forward.1} parent=0 // pred_check
    _
  $region15: #{_feature_forward.1} parent=0 // pred_check_branch
    %17 = sbr.rel (0) target = $region17
  $region16: #{_feature_forward.1} parent=0 // pred_region
    _
  $region17: #{_feature_forward.1} parent=0 // pred_fallthru
    _
  // Predicated region
  $region18: #{_feature_forward.1} parent=0 // pred_check
    _
  $region19: #{_feature_forward.1} parent=0 // pred_check_branch
    %19 = sbr.rel (0) target = $region21
  $region20: #{_feature_forward.1} parent=0 // pred_region
    _
  $region21: #{_feature_forward.1} parent=0 // pred_fallthru
    _
  %v20 = vld [vmem:[%s0] sm:$0xff]
  %v21 = vld [vmem:[%s1] sm:$0xff]
  %v22 = vld [vmem:[%s1 + $0x8] sm:$0xff]
  %v23 = vld [vmem:[%s1 + $0x10] sm:$0xff]
  %v24 = vld [vmem:[%s1 + $0x18] sm:$0xff]
  %v25 = vld [vmem:[%s1 + $0x20] sm:$0xff]
  %v26 = vld [vmem:[%s1 + $0x28] sm:$0xff]
  %v27 = vld [vmem:[%s1 + $0x30] sm:$0xff]
  %v28 = vld [vmem:[%s1 + $0x38] sm:$0xff]
  %v29 = vld [vmem:[%s1 + $0x40] sm:$0xff]
  %v30 = vld [vmem:[%s1 + $0x48] sm:$0xff]
  %v31 = vld [vmem:[%s1 + $0x50] sm:$0xff]
  %v32 = vld [vmem:[%s1 + $0x58] sm:$0xff]
  %v33 = vld [vmem:[%s1 + $0x60] sm:$0xff]
  %v34 = vld [vmem:[%s1 + $0x68] sm:$0xff]
  %v35 = vld [vmem:[%s1 + $0x70] sm:$0xff]
  %v36 = vld [vmem:[%s1 + $0x78] sm:$0xff]
  %v37 = vld [vmem:[%s2] sm:$0x1]
  %v39 = vlaneseq
  %v40 = vshrl.u32 %v39, 7
  %v41 = vsub.s32 0, %v40
  %v42 = vrot.slane %v37, %v41
  %44 = vmatprep.subr.mxu0 0.0
  %45 = vmatpush1.msra.mxu0 %v36
  %46 = vmatprep.subr.mxu0 0.0
  %47 = vmatpush1.msra.mxu0 %v35
  %48 = vmatprep.subr.mxu0 0.0
  %49 = vmatpush1.msra.mxu0 %v34
  %50 = vmatprep.subr.mxu0 0.0
  %51 = vmatpush1.msra.mxu0 %v33
  %52 = vmatprep.subr.mxu0 0.0
  %53 = vmatpush1.msra.mxu0 %v32
  %54 = vmatprep.subr.mxu0 0.0
  %55 = vmatpush1.msra.mxu0 %v31
  %56 = vmatprep.subr.mxu0 0.0
  %57 = vmatpush1.msra.mxu0 %v30
  %58 = vmatprep.subr.mxu0 0.0
  %59 = vmatpush1.msra.mxu0 %v29
  %60 = vmatprep.subr.mxu0 0.0
  %61 = vmatpush1.msra.mxu0 %v28
  %62 = vmatprep.subr.mxu0 0.0
  %63 = vmatpush1.msra.mxu0 %v27
  %64 = vmatprep.subr.mxu0 0.0
  %65 = vmatpush1.msra.mxu0 %v26
  %66 = vmatprep.subr.mxu0 0.0
  %67 = vmatpush1.msra.mxu0 %v25
  %68 = vmatprep.subr.mxu0 0.0
  %69 = vmatpush1.msra.mxu0 %v24
  %70 = vmatprep.subr.mxu0 0.0
  %71 = vmatpush1.msra.mxu0 %v23
  %72 = vmatprep.subr.mxu0 0.0
  %73 = vmatpush1.msra.mxu0 %v22
  %74 = vmatprep.subr.mxu0 0.0
  %75 = vmatpush1.msra.mxu0 %v21
  %76 = vmatprep.subr.mxu0 0.0
  %77 = vmatpush2.msra.mxu0 0.0
  %78 = vmatprep.subr.mxu0 0.0
  %79 = vmatpush2.msra.mxu0 0.0
  %80 = vmatprep.subr.mxu0 0.0
  %81 = vmatpush2.msra.mxu0 0.0
  %82 = vmatprep.subr.mxu0 0.0
  %83 = vmatpush2.msra.mxu0 0.0
  %84 = vmatprep.subr.mxu0 0.0
  %85 = vmatpush2.msra.mxu0 0.0
  %86 = vmatprep.subr.mxu0 0.0
  %87 = vmatpush2.msra.mxu0 0.0
  %88 = vmatprep.subr.mxu0 0.0
  %89 = vmatpush2.msra.mxu0 0.0
  %90 = vmatprep.subr.mxu0 0.0
  %91 = vmatpush2.msra.mxu0 0.0
  %92 = vmatprep.subr.mxu0 0.0
  %93 = vmatpush2.msra.mxu0 0.0
  %94 = vmatprep.subr.mxu0 0.0
  %95 = vmatpush2.msra.mxu0 0.0
  %96 = vmatprep.subr.mxu0 0.0
  %97 = vmatpush2.msra.mxu0 0.0
  %98 = vmatprep.subr.mxu0 0.0
  %99 = vmatpush2.msra.mxu0 0.0
  %100 = vmatprep.subr.mxu0 0.0
  %101 = vmatpush2.msra.mxu0 0.0
  %102 = vmatprep.subr.mxu0 0.0
  %103 = vmatpush2.msra.mxu0 0.0
  %104 = vmatprep.subr.mxu0 0.0
  %105 = vmatpush2.msra.mxu0 0.0
  %106 = vmatprep.subr.mxu0 0.0
  %107 = vmatpush2.msra.mxu0 0.0
  %108 = vmatprep.mubr.f32.mxu0 0.0
  %109 = vmatmul.mubr.f32.gmra.mxu0 %v20
  %v110 = vpop.f32.mrf.mxu0
  %v111 = vadd.f32 %v42, %v110
  %v112 = vpop.f32.mrf.mxu0
  %113 = vdwg.mxu0
  %v114 = vmax.f32 %v111, 0.0
  %v115 = vld [vmem:[%s3] sm:$0xff]
  %v116 = vld [vmem:[%s3 + $0x8] sm:$0xff]
  %v117 = vld [vmem:[%s3 + $0x10] sm:$0xff]
  %v118 = vld [vmem:[%s3 + $0x18] sm:$0xff]
  %v119 = vld [vmem:[%s3 + $0x20] sm:$0xff]
  %v120 = vld [vmem:[%s3 + $0x28] sm:$0xff]
  %v121 = vld [vmem:[%s3 + $0x30] sm:$0xff]
  %v122 = vld [vmem:[%s3 + $0x38] sm:$0xff]
  %v123 = vld [vmem:[%s4] sm:$0x1]
  %v125 = vlaneseq
  %v126 = vshrl.u32 %v125, 7
  %v127 = vsub.s32 0, %v126
  %v128 = vrot.slane %v123, %v127
  %vm130 = vcmask 523264
  %v132 = vsel %vm130, %v114, 0
  %134 = vmatprep.subr.mxu0 0.0
  %135 = vmatpush1.msra.mxu0 0.0
  %136 = vmatprep.subr.mxu0 0.0
  %137 = vmatpush1.msra.mxu0 0.0
  %138 = vmatprep.subr.mxu0 0.0
  %139 = vmatpush1.msra.mxu0 0.0
  %140 = vmatprep.subr.mxu0 0.0
  %141 = vmatpush1.msra.mxu0 0.0
  %142 = vmatprep.subr.mxu0 0.0
  %143 = vmatpush1.msra.mxu0 0.0
  %144 = vmatprep.subr.mxu0 0.0
  %145 = vmatpush1.msra.mxu0 0.0
  %146 = vmatprep.subr.mxu0 0.0
  %147 = vmatpush1.msra.mxu0 0.0
  %148 = vmatprep.subr.mxu0 0.0
  %149 = vmatpush1.msra.mxu0 0.0
  %150 = vmatprep.subr.mxu0 0.0
  %151 = vmatpush1.msra.mxu0 %v122
  %152 = vmatprep.subr.mxu0 0.0
  %153 = vmatpush1.msra.mxu0 %v121
  %154 = vmatprep.subr.mxu0 0.0
  %155 = vmatpush1.msra.mxu0 %v120
  %156 = vmatprep.subr.mxu0 0.0
  %157 = vmatpush1.msra.mxu0 %v119
  %158 = vmatprep.subr.mxu0 0.0
  %159 = vmatpush1.msra.mxu0 %v118
  %160 = vmatprep.subr.mxu0 0.0
  %161 = vmatpush1.msra.mxu0 %v117
  %162 = vmatprep.subr.mxu0 0.0
  %163 = vmatpush1.msra.mxu0 %v116
  %164 = vmatprep.subr.mxu0 0.0
  %165 = vmatpush1.msra.mxu0 %v115
  %166 = vmatprep.subr.mxu0 0.0
  %167 = vmatpush2.msra.mxu0 0.0
  %168 = vmatprep.subr.mxu0 0.0
  %169 = vmatpush2.msra.mxu0 0.0
  %170 = vmatprep.subr.mxu0 0.0
  %171 = vmatpush2.msra.mxu0 0.0
  %172 = vmatprep.subr.mxu0 0.0
  %173 = vmatpush2.msra.mxu0 0.0
  %174 = vmatprep.subr.mxu0 0.0
  %175 = vmatpush2.msra.mxu0 0.0
  %176 = vmatprep.subr.mxu0 0.0
  %177 = vmatpush2.msra.mxu0 0.0
  %178 = vmatprep.subr.mxu0 0.0
  %179 = vmatpush2.msra.mxu0 0.0
  %180 = vmatprep.subr.mxu0 0.0
  %181 = vmatpush2.msra.mxu0 0.0
  %182 = vmatprep.subr.mxu0 0.0
  %183 = vmatpush2.msra.mxu0 0.0
  %184 = vmatprep.subr.mxu0 0.0
  %185 = vmatpush2.msra.mxu0 0.0
  %186 = vmatprep.subr.mxu0 0.0
  %187 = vmatpush2.msra.mxu0 0.0
  %188 = vmatprep.subr.mxu0 0.0
  %189 = vmatpush2.msra.mxu0 0.0
  %190 = vmatprep.subr.mxu0 0.0
  %191 = vmatpush2.msra.mxu0 0.0
  %192 = vmatprep.subr.mxu0 0.0
  %193 = vmatpush2.msra.mxu0 0.0
  %194 = vmatprep.subr.mxu0 0.0
  %195 = vmatpush2.msra.mxu0 0.0
  %196 = vmatprep.subr.mxu0 0.0
  %197 = vmatpush2.msra.mxu0 0.0
  %198 = vmatprep.mubr.f32.mxu0 0.0
  %199 = vmatmul.mubr.f32.gmra.mxu0 %v132
  %v200 = vpop.f32.mrf.mxu0
  %v201 = vadd.f32 %v128, %v200
  %v202 = vpop.f32.mrf.mxu0
  %203 = vdwg.mxu0
  %204 = vst [vmem:[%s5] sm:$0xff] %v201
  // Predicated region
  $region22: #{_feature_forward.1} parent=0 // pred_check
    _
  $region23: #{_feature_forward.1} parent=0 // pred_check_branch
    %206 = sbr.rel (0) target = $region25
  $region24: #{_feature_forward.1} parent=0 // pred_region
    _
  $region25: #{_feature_forward.1} parent=0 // pred_fallthru
    _
  // Predicated region
  $region26: #{_feature_forward.1} parent=0 // pred_check
    _
  $region27: #{_feature_forward.1} parent=0 // pred_check_branch
    %208 = sbr.rel (0) target = $region29
  $region28: #{_feature_forward.1} parent=0 // pred_region
    _
  $region29: #{_feature_forward.1} parent=0 // pred_fallthru
    _

</llo_original>
